<compile_context>
chip_gen: v7x
topology: tpu7x:2x2x1
jax: 0.10.0
libtpu: 0.0.40
codegen_flags: <defaults>
</compile_context>

<pallas_src>
import functools

import jax
import jax.numpy as jnp
from jax.experimental import pallas as pl
from jax.experimental.pallas import tpu as pltpu


def flip_half(x):
    """Assumed semantics: time-reverse the second half of the channels."""
    c = x.shape[1]
    return jnp.concatenate([x[:, : c // 2], x[:, c // 2 :, ::-1]], axis=1)


# ---------------------------------------------------------------------------
# Pallas kernel: depthwise 1-D conv over fused (B*C, T) rows with fused
# 'same' zero padding.
# ---------------------------------------------------------------------------

def _shift_cols(x, off):
    """y[:, t] = x[:, t + off] where 0 <= t + off < T, else 0."""
    if off == 0:
        return x
    rows, t = x.shape
    if abs(off) >= t:
        return jnp.zeros_like(x)
    if off > 0:
        return jnp.concatenate(
            [x[:, off:], jnp.zeros((rows, off), x.dtype)], axis=1)
    return jnp.concatenate(
        [jnp.zeros((rows, -off), x.dtype), x[:, : t + off]], axis=1)


def _dwconv1d_rows_kernel(x_ref, w_ref, o_ref, *, padding, k_size):
    # x_ref: (RT, T) rows of the fused (B*C, T) input
    # w_ref: (RT, K) per-row taps (second channel half already time-reversed)
    # o_ref: (RT, T) output
    x = x_ref[...]                       # keep native dtype (bf16 stays bf16)
    rows, t = x.shape
    acc = jnp.zeros((rows, t), jnp.float32)
    # K is tiny (3) and static -> unrolled shifted MACs on the VPU; the
    # multiply promotes to f32 per-vreg, no materialized f32 copy of x.
    for k in range(k_size):
        w_col = w_ref[:, k : k + 1].astype(jnp.float32)      # (RT, 1)
        acc = acc + w_col * _shift_cols(x, k - padding)
    o_ref[...] = acc.astype(o_ref.dtype)


# ---------------------------------------------------------------------------
# Tiling / VMEM budgeting helpers.
# ---------------------------------------------------------------------------

def _vmem_capacity_bytes():
    """Generation-aware VMEM capacity; conservative (v7x-sized) fallback."""
    get_info = getattr(pltpu, "get_tpu_info", None)
    if get_info is not None:
        try:
            cap = getattr(get_info(), "vmem_capacity_bytes", None)
            if cap:
                return int(cap)
        except Exception:
            pass
    return 64 * 1024 * 1024


def _sublane_align(itemsize):
    # f32 -> 8 rows per vreg tile, bf16 -> 16, int8/fp8 -> 32.
    return {4: 8, 2: 16, 1: 32}.get(itemsize, 8)


def _pick_row_tile(n_rows, t, itemsize, vmem_limit_bytes,
                   io_block_budget=8 << 20, min_steps=4):
    """Largest dtype-aligned row tile whose live VMEM fits the budget."""
    align = _sublane_align(itemsize)
    lanes = max(-(-t // 128) * 128, 128)          # lane dim pads to 128 in VMEM
    # Live VMEM per tile row:
    #   double-buffered in + out blocks     : 4 * lanes * itemsize
    #   f32 accumulator + one shifted temp  : 2 * lanes * 4
    #   lane-padded (RT,K)->(RT,128) weight : 2 * 128 * 4   (double-buffered)
    per_row_live = 4 * lanes * itemsize + 8 * lanes + 1024
    per_row_io = 2 * lanes * itemsize             # one in + one out block
    rows = min(io_block_budget // per_row_io,
               (vmem_limit_bytes * 3 // 4) // per_row_live)
    rows = max(align, (rows // align) * align)
    # Keep >= min_steps grid steps so dual-TC chips (v7x megacore) stay busy.
    if n_rows >= min_steps * align:
        rows = min(rows, max(align, ((n_rows // min_steps) // align) * align))
    if rows >= n_rows:
        rows = n_rows                             # full dim is always legal
    return rows


# ---------------------------------------------------------------------------
# pallas_call wrapper.
# ---------------------------------------------------------------------------

def depthwise_symmetric_conv1d(x, w_full, padding, *, row_tile=None):
    """x: (B, C, T); w_full: (C, K) per-channel taps -> (B, C, T)."""
    b, c, t = x.shape
    k = w_full.shape[1]
    assert 2 * padding == k - 1, "module shapes require symmetric 'same' padding"

    n_rows = b * c
    x2d = x.reshape(n_rows, t)                          # free, contiguous view
    w_rows = jnp.tile(w_full.astype(jnp.float32), (b, 1))   # (B*C, K), ~KiBs

    itemsize = jnp.dtype(x.dtype).itemsize
    vmem_cap = _vmem_capacity_bytes()
    vmem_limit = min((vmem_cap * 3) // 4, 100 * 1024 * 1024)
    if row_tile is None:
        row_tile = _pick_row_tile(n_rows, t, itemsize, vmem_limit)
    align = _sublane_align(itemsize)
    assert row_tile == n_rows or row_tile % align == 0, \
        "row_tile must be sublane-aligned for this dtype (or the full row dim)"

    n_steps = -(-n_rows // row_tile)
    kernel = functools.partial(_dwconv1d_rows_kernel, padding=padding, k_size=k)

    out2d = pl.pallas_call(
        kernel,
        out_shape=jax.ShapeDtypeStruct((n_rows, t), x.dtype),
        grid=(n_steps,),
        in_specs=[
            pl.BlockSpec((row_tile, t), lambda i: (i, 0)),
            pl.BlockSpec((row_tile, k), lambda i: (i, 0)),
        ],
        out_specs=pl.BlockSpec((row_tile, t), lambda i: (i, 0)),
        compiler_params=pltpu.CompilerParams(
            dimension_semantics=("parallel",),
            vmem_limit_bytes=vmem_limit,
        ),
    )(x2d, w_rows)
    return out2d.reshape(b, c, t)


# ---------------------------------------------------------------------------
# Module wrapper (forward-pass semantics of the PyTorch module).
# ---------------------------------------------------------------------------

class SymmetricLightweightConvPallas:
    """JAX/Pallas re-implementation of SymmetricLightweightConv.forward."""

    def __init__(self, d_size, groups=2, kernel_size=3, padding=1, n_heads=1,
                 weight_softmax=True, bias=False, dropout=0.0, training=True,
                 key=jax.random.PRNGKey(0)):
        # F.conv1d shape validity over the (2B, C//2, T) view forces a
        # depthwise conv (int(groups/2) == C//2) and n_heads*C/2 == C//2.
        assert groups == d_size, "valid conv shapes require groups == d_size"
        assert int(n_heads * d_size / 2) == d_size // 2, \
            "valid output reshape requires n_heads*d_size/2 == d_size//2"
        assert 2 * padding == kernel_size - 1, \
            "the view back to (B, C, T) requires 'same' symmetric padding"
        self.input_size = d_size
        self.kernel_size = kernel_size
        self.n_heads = n_heads
        self.padding = padding
        self.groups = groups
        self.weight_softmax = weight_softmax
        self.dropout = dropout
        self.weight_dropout = 0.1
        self.training = training
        wkey, bkey = jax.random.split(key)
        # nn.Parameter(torch.Tensor(n_heads*C/2, 1, K)) -> deterministic init.
        self.weight = 0.1 * jax.random.normal(
            wkey, (int(n_heads * d_size / 2), 1, kernel_size), jnp.float32)
        self.bias = (0.1 * jax.random.normal(bkey, (d_size,), jnp.float32)
                     if bias else None)

    def __call__(self, x, dropout_key=None):
        b, c, t = x.shape
        assert c == self.input_size

        w = self.weight                                  # (C//2, 1, K)
        if self.weight_softmax:
            w = jax.nn.softmax(w, axis=-1)
        if self.training and self.weight_dropout > 0.0 and dropout_key is not None:
            keep = jax.random.bernoulli(
                dropout_key, 1.0 - self.weight_dropout, w.shape)
            w = jnp.where(keep, w / (1.0 - self.weight_dropout), 0.0)
        w_half = w[:, 0, :]                              # (C//2, K)

        # Symmetric trick: instead of flip_half(x) -> conv -> flip_half(out),
        # convolve the ORIGINAL x and use time-reversed taps on the second
        # channel half (exact for the 'same' padding asserted above).
        w_full = jnp.concatenate([w_half, w_half[:, ::-1]], axis=0)  # (C, K)

        out = depthwise_symmetric_conv1d(x, w_full, self.padding)
        if self.bias is not None:
            out = out + self.bias.reshape(1, -1, 1)
        return out


# ---------------------------------------------------------------------------
# Pure-JAX reference: mirrors the original PyTorch forward literally
# (flip_half -> reshape -> depthwise conv -> reshape -> flip_half), so it
# independently validates the weight-flip rewrite inside the Pallas path.
# ---------------------------------------------------------------------------

def _reference_forward(mod, x, dropout_key):
    b, c, t = x.shape
    xf = flip_half(x).reshape(b * 2, c // 2, t)
    w = mod.weight
    if mod.weight_softmax:
        w = jax.nn.softmax(w, axis=-1)
    if mod.training and mod.weight_dropout > 0.0 and dropout_key is not None:
        keep = jax.random.bernoulli(dropout_key, 1.0 - mod.weight_dropout, w.shape)
        w = jnp.where(keep, w / (1.0 - mod.weight_dropout), 0.0)
    out = jax.lax.conv_general_dilated(
        xf, w, window_strides=(1,), padding=[(mod.padding, mod.padding)],
        dimension_numbers=("NCH", "OIH", "NCH"),
        feature_group_count=c // 2)
    out = flip_half(out.reshape(b, c, t))
    if mod.bias is not None:
        out = out + mod.bias.reshape(1, -1, 1)
    return out


if __name__ == "__main__":
    key = jax.random.PRNGKey(0)
    xkey, pkey, dkey, x2key, w2key, x3key, w3key = jax.random.split(key, 7)

    # --- 1) end-to-end module check at small shapes -------------------------
    B, C, T = 2, 4, 16
    x = jax.random.normal(xkey, (B, C, T), jnp.float32)
    mod = SymmetricLightweightConvPallas(
        d_size=C, groups=C, kernel_size=3, padding=1, n_heads=1,
        weight_softmax=True, bias=False, training=True, key=pkey)
    out = jax.block_until_ready(mod(x, dkey))
    ref = jax.block_until_ready(_reference_forward(mod, x, dkey))
    assert out.shape == (B, C, T)
    assert jnp.allclose(out, ref, atol=1e-5, rtol=1e-5), "module mismatch"

    # --- 2) multi-step grid, lane-dense T (production-style path) -----------
    B2, C2, T2 = 2, 8, 128
    x2 = jax.random.normal(x2key, (B2, C2, T2), jnp.float32)
    w2 = jax.random.normal(w2key, (C2, 3), jnp.float32)
    out2 = jax.block_until_ready(
        depthwise_symmetric_conv1d(x2, w2, padding=1, row_tile=8))
    ref2 = jax.lax.conv_general_dilated(
        x2, w2[:, None, :], window_strides=(1,), padding=[(1, 1)],
        dimension_numbers=("NCH", "OIH", "NCH"), feature_group_count=C2)
    assert jnp.allclose(out2, ref2, atol=1e-5, rtol=1e-5), "tiled-path mismatch"

    # --- 3) unaligned-T fallback path, multi-step grid ----------------------
    B3, C3, T3 = 2, 16, 96
    x3 = jax.random.normal(x3key, (B3, C3, T3), jnp.float32)
    w3 = jax.random.normal(w3key, (C3, 3), jnp.float32)
    out3 = jax.block_until_ready(
        depthwise_symmetric_conv1d(x3, w3, padding=1, row_tile=16))
    ref3 = jax.lax.conv_general_dilated(
        x3, w3[:, None, :], window_strides=(1,), padding=[(1, 1)],
        dimension_numbers=("NCH", "OIH", "NCH"), feature_group_count=C3)
    assert jnp.allclose(out3, ref3, atol=1e-5, rtol=1e-5), "fallback-path mismatch"

    print("KERNEL_OK")
</pallas_src>

<mosaic_0001>
module attributes {stable_mosaic.version = 11 : i64} {
  func.func @_dwconv1d_rows_kernel(%arg0: i32, %arg1: memref<8x16xf32, #tpu.memory_space<vmem>>, %arg2: memref<8x3xf32, #tpu.memory_space<vmem>>, %arg3: memref<8x16xf32, #tpu.memory_space<vmem>>) attributes {dimension_semantics = [#tpu.dimension_semantics<parallel>], iteration_bounds = array<i64: 1>, scalar_prefetch = 0 : i64, scratch_operands = 0 : i64, tpu.core_type = #tpu.core_type<tc>, window_params = [{transform_indices = @transform_0, window_bounds = array<i64: 8, 16>}, {transform_indices = @transform_1, window_bounds = array<i64: 8, 3>}, {transform_indices = @transform_2, window_bounds = array<i64: 8, 16>}]} {
    %c0 = arith.constant 0 : index
    %c0_0 = arith.constant 0 : index
    %0 = vector.load %arg1[%c0, %c0_0] : memref<8x16xf32, #tpu.memory_space<vmem>>, vector<8x16xf32>
    %cst = arith.constant 0.000000e+00 : f32
    %1 = vector.broadcast %cst : f32 to vector<8x16xf32>
    %c0_1 = arith.constant 0 : index
    %c0_2 = arith.constant 0 : index
    %2 = vector.load %arg2[%c0_1, %c0_2] : memref<8x3xf32, #tpu.memory_space<vmem>>, vector<8x1xf32>
    %cst_3 = arith.constant 0.000000e+00 : f32
    %3 = vector.broadcast %cst_3 : f32 to vector<8x1xf32>
    %4 = vector.extract_strided_slice %0 {offsets = [0, 0], sizes = [8, 15], strides = [1, 1]} : vector<8x16xf32> to vector<8x15xf32>
    %5 = tpu.concatenate %3, %4 in 1 : vector<8x1xf32>, vector<8x15xf32> -> vector<8x16xf32>
    %6 = vector.broadcast %2 : vector<8x1xf32> to vector<8x16xf32>
    %7 = arith.mulf %6, %5 : vector<8x16xf32>
    %8 = arith.addf %1, %7 : vector<8x16xf32>
    %c0_4 = arith.constant 0 : index
    %c1 = arith.constant 1 : index
    %9 = vector.load %arg2[%c0_4, %c1] : memref<8x3xf32, #tpu.memory_space<vmem>>, vector<8x1xf32>
    %10 = vector.broadcast %9 : vector<8x1xf32> to vector<8x16xf32>
    %11 = arith.mulf %10, %0 : vector<8x16xf32>
    %12 = arith.addf %8, %11 : vector<8x16xf32>
    %c0_5 = arith.constant 0 : index
    %c2 = arith.constant 2 : index
    %13 = vector.load %arg2[%c0_5, %c2] : memref<8x3xf32, #tpu.memory_space<vmem>>, vector<8x1xf32>
    %14 = vector.extract_strided_slice %0 {offsets = [0, 1], sizes = [8, 15], strides = [1, 1]} : vector<8x16xf32> to vector<8x15xf32>
    %cst_6 = arith.constant 0.000000e+00 : f32
    %15 = vector.broadcast %cst_6 : f32 to vector<8x1xf32>
    %16 = tpu.concatenate %14, %15 in 1 : vector<8x15xf32>, vector<8x1xf32> -> vector<8x16xf32>
    %17 = vector.broadcast %13 : vector<8x1xf32> to vector<8x16xf32>
    %18 = arith.mulf %17, %16 : vector<8x16xf32>
    %19 = arith.addf %12, %18 : vector<8x16xf32>
    %c0_7 = arith.constant 0 : index
    %c0_8 = arith.constant 0 : index
    %20 = vector.load %arg3[%c0_7, %c0_8] : memref<8x16xf32, #tpu.memory_space<vmem>>, vector<8x16xf32>
    tpu.vector_store %arg3[%c0_7, %c0_8], %19 {strides = array<i32>} : memref<8x16xf32, #tpu.memory_space<vmem>>, vector<8x16xf32>,
    return
  }
  func.func @transform_0(%arg0: i32) -> (i32, i32) {
    %c0_i32 = arith.constant 0 : i32
    %c0_i32_0 = arith.constant 0 : i32
    return %arg0, %c0_i32 : i32, i32
  }
  func.func @transform_1(%arg0: i32) -> (i32, i32) {
    %c0_i32 = arith.constant 0 : i32
    %c0_i32_0 = arith.constant 0 : i32
    return %arg0, %c0_i32 : i32, i32
  }
  func.func @transform_2(%arg0: i32) -> (i32, i32) {
    %c0_i32 = arith.constant 0 : i32
    %c0_i32_0 = arith.constant 0 : i32
    return %arg0, %c0_i32 : i32, i32
  }
}

</mosaic_0001>

<llo_original>
// kernel: tpu_custom_call.1
$region0: #{tpu_custom_call.1}
  #allocation0 [shape = 'u32[]', space=smem, size = 0x4, offset = 0x4, fixed_abs, tag = 'smem constant byte address 0x4 - core index']
  #allocation1 [shape = 'u32[144,128]{1,0:T(1,128)}', space=vmem, size = 0x12000, scoped, tag = 'internal scratch']
  %s0 = inlined_call_operand.vmem [shape: f32[8,16], index: 0, kind: input, shape index: {}]
  %s1 = inlined_call_operand.vmem [shape: f32[8,3], index: 1, kind: input, shape index: {}]
  %s2 = inlined_call_operand.hbm [shape: f32[8,16], index: 2, kind: output, shape index: {}]
  %s3 = sld [smem:[#allocation0]]
  $region18: #{tpu_custom_call.1} parent=0
    _
  %s5 = ssub.s32 1, %s3
  %s6 = scalar_select 0, %s5, %s3
  $region1: #{tpu_custom_call.1} parent=0
    #allocation2 [shape = 'u8[4096]{0}', space=vmem, size = 0x1000, scoped, tag = 'output window, operand 0, single buffered']
    #allocation3 [shape = 's32[1]{0}', space=sflag, size = 0x4, scoped, tag = 'scoped memory for tpu_custom_call.1']
    %7 = vsyncpa [#allocation3], 0
    // Predicated region
    $region2: #{tpu_custom_call.1} parent=1 // pred_check
      _
    $region3: #{tpu_custom_call.1} parent=1 // pred_check_branch
      %9 = sbr.rel (0) target = $region5
    $region4: #{tpu_custom_call.1} parent=1 // pred_region
      _
    $region5: #{tpu_custom_call.1} parent=1 // pred_fallthru
      _
    // Predicated region
    $region6: #{tpu_custom_call.1} parent=1 // pred_check
      _
    $region7: #{tpu_custom_call.1} parent=1 // pred_check_branch
      %11 = sbr.rel (0) target = $region9
    $region8: #{tpu_custom_call.1} parent=1 // pred_region
      _
    $region9: #{tpu_custom_call.1} parent=1 // pred_fallthru
      _
    %v12 = vld [vmem:[%s0] sm:$0xff]
    %v13 = vld [vmem:[%s1] sm:$0xff]
    %15 = vrot.lane.b32.xlu0 %v12, 1
    %v16 = vpop.permute.xlu0 %15
    %vm18 = vcmask 7168
    %v19 = vsel %vm18, 0.0, %v16
    %21 = vset.pattern.permute.xlu0 0
    %22 = vperm.xlu0 %21, %v13
    %v23 = vpop.permute.xlu0 %22
    %v25 = vmul.f32 %v23, %v19
    %v26 = vadd.f32 %v25, 0.0
    %27 = vset.pattern.permute.xlu0 1
    %28 = vperm.xlu0 %27, %v13
    %v29 = vpop.permute.xlu0 %28
    %v31 = vmul.f32 %v29, %v12
    %v32 = vadd.f32 %v26, %v31
    %33 = vrot.lane.b32.xlu0 %v12, 127
    %v34 = vpop.permute.xlu0 %33
    %vm36 = vcmask 121856
    %v37 = vsel %vm36, %v34, 0.0
    %38 = vset.pattern.permute.xlu0 2
    %39 = vperm.xlu0 %38, %v13
    %v40 = vpop.permute.xlu0 %39
    %v42 = vmul.f32 %v40, %v37
    %v43 = vadd.f32 %v32, %v42
    %vm44 = vcmask 130048
    %45 = vst.msk [vmem:[#allocation2] sm:$0xff] %vm44, %v43
    // Predicated region
    $region10: #{tpu_custom_call.1} parent=1 // pred_check
      _
    $region11: #{tpu_custom_call.1} parent=1 // pred_check_branch
      %47 = sbr.rel (0) target = $region13
    $region12: #{tpu_custom_call.1} parent=1 // pred_region
      %s49 = ssub.s32 128, 128
      %50 = vsyncadd [#allocation3], %s49
      %s52 = sshll.u32 [#allocation2], 4
      %s53 = int_to_ptr.vmem [resolvable:$true] %s52
      %55 = dma.vmem_to_hbm [thread:$0]  %s53, 128, %s2, [#allocation3]
    $region13: #{tpu_custom_call.1} parent=1 // pred_fallthru
      _
    // Predicated region
    $region14: #{tpu_custom_call.1} parent=1 // pred_check
      _
    $region15: #{tpu_custom_call.1} parent=1 // pred_check_branch
      %57 = sbr.rel (0) target = $region17
    $region16: #{tpu_custom_call.1} parent=1 // pred_region
      %58 = dma.done [#allocation3], 128
    $region17: #{tpu_custom_call.1} parent=1 // pred_fallthru
      _
    %59 = vsyncpa [#allocation3], 1

</llo_original>
